<compile_context>
chip_gen: v5e
topology: v5e:2x2
jax: 0.10.0
libtpu: 0.0.40
codegen_flags: <defaults>
</compile_context>

<pallas_src>
import functools

import jax
import jax.numpy as jnp
from jax.experimental import pallas as pl
from jax.experimental.pallas import tpu as pltpu

_VMEM_LIMIT = 48 * 1024 * 1024  # < v7x physical 64 MiB, > v5e/v6e scoped default


def _proj_kernel(x_ref, w_ref, alr_ref, fs_ref, elr_ref):
    """Fused all-head projection for one row tile.

    x_ref   : [Tn, Din]   bf16 node features
    w_ref   : [Din, H*F]  bf16 fc weight (torch weight transposed)
    alr_ref : [H*F, 2H]   f32  block-diagonal [attn_l | attn_r]
    fs_ref  : [Tn, H*F]   bf16 projected features, all heads, lane-dense
    elr_ref : [Tn, 2H]    f32  [el | er] attention logits
    """
    fs = jnp.dot(x_ref[...], w_ref[...],
                 preferred_element_type=jnp.float32)        # bf16 MXU, f32 acc
    fs_ref[...] = fs.astype(fs_ref.dtype)
    # Tiny [*, HF] x [HF, 2H] matmul: keep f32 for logit accuracy (negligible).
    elr_ref[...] = jnp.dot(fs, alr_ref[...],
                           preferred_element_type=jnp.float32)


def _attn_agg_kernel(fs_ref, elt_ref, er_ref, adjt_ref, rst_ref, attn_ref,
                     *, num_heads, out_feats, negative_slope):
    """Masked edge-softmax + aggregation for one dst tile, all heads.

    fs_ref  : [N, H*F]      bf16 projected src features (grid-invariant)
    elt_ref : [H, N]        f32  per-src logits, pre-transposed (grid-invariant)
    er_ref  : [Tdst, H]     f32  per-dst logits for this tile
    adjt_ref: [Tdst, N]     int8 adjacency mask in [dst, src] layout
    rst_ref : [Tdst, H*F]   f32  aggregated output features (lane-dense)
    attn_ref: [H, Tdst, N]  f32  attention a[head, dst, src]
    """
    H, F = num_heads, out_feats
    fs = fs_ref[...]                               # [N, HF] bf16
    elt = elt_ref[...]                             # [H, N]
    er = er_ref[...]                               # [Tdst, H]
    adj = adjt_ref[...].astype(jnp.float32)        # int8 {0,1} -> f32 in regs

    # Additive mask bias: computed ONCE per dst tile, shared by all heads.
    neg_big = jnp.float32(-1e30)
    bias = jnp.where(adj > 0.0, jnp.float32(0.0), neg_big)   # [Tdst, N]

    ns = jnp.float32(negative_slope)
    outs = []
    for h in range(H):                              # static unroll, H is small
        # e[dst, src] = leaky_relu(er[dst] + el[src]) + mask_bias[dst, src]
        e = er[:, h:h + 1] + elt[h:h + 1, :]        # [Tdst, N], no transpose
        e = jnp.maximum(e, ns * e)                  # leaky_relu as one vmax
        e = e + bias
        # edge_softmax over incoming edges (src axis == lanes).
        m = jnp.max(e, axis=-1, keepdims=True)      # [Tdst, 1]
        # TODO(synk): bf16 exp (EUP) on v6e/v7x if the kernel flips EUP-bound.
        p = jnp.exp(e - m)                          # masked entries -> 0
        denom = jnp.sum(p, axis=-1, keepdims=True)  # [Tdst, 1]
        inv = pl.reciprocal(denom, approx=True)     # EUP, frees the VPU
        inv = inv * (2.0 - denom * inv)             # one Newton step
        a = p * inv                                 # [Tdst, N]
        attn_ref[h] = a
        # update_all(u_mul_e, sum): rst[dst, f] = sum_src a[dst,src]*fs[src,f]
        fs_h = fs[:, h * F:(h + 1) * F]             # [N, F] bf16
        outs.append(jnp.dot(a.astype(jnp.bfloat16), fs_h,
                            preferred_element_type=jnp.float32))
    # Single lane-dense [Tdst, H*F] writeback instead of H 16-lane slices.
    rst_ref[...] = jnp.concatenate(outs, axis=-1)


def _pick_row_tile(n, cap=512):
    """Projection row tile: multiple of 16 (bf16 sublanes), divides N,
    leaves >= 2 grid steps so both v7x TensorCores get work."""
    for t in range(min(n, cap), 15, -1):
        if n % t == 0 and t % 16 == 0 and n // t >= 2:
            return t
    return n


def _pick_dst_tile(n, num_heads, hf, vmem_budget=20 * 1024 * 1024):
    """Dst tile for the attention kernel, sized from a VMEM budget so the
    double-buffered [H, Tdst, N] attention block never overflows v7x's 64 MiB
    while still growing large on v5e/v6e (128 MiB)."""
    def fits(t):
        pipelined = 2 * (t * n                      # adj^T tile (int8)
                         + 4 * t * num_heads        # er tile
                         + 4 * t * hf               # rst tile
                         + 4 * num_heads * t * n)   # attn tile
        invariant = 2 * (2 * n * hf                 # fs (bf16)
                         + 4 * num_heads * n)       # el^T
        temps = 4 * 4 * t * n                       # bias / e / p / a (f32)
        return pipelined + invariant + temps <= vmem_budget

    candidates = [t for t in range(n, 0, -1)
                  if n % t == 0 and (t == n or t % 32 == 0)]
    for t in candidates:                            # prefer >= 2 grid steps
        if n // t >= 2 and fits(t):
            return t
    for t in candidates:
        if fits(t):
            return t
    # TODO(synk): pad N / cdiv grid with pl.when mask for awkward shapes.
    return candidates[-1]


def my_gat_conv(x, adj, fc_weight_t, attn_l, attn_r,
                num_heads, out_feats, negative_slope=0.2, dst_tile=None):
    """Pallas implementation of myGATConv.forward (module defaults).

    Args:
      x:           [N, in_feats]        node features
      adj:         [N, N] {0,1}         adj[src, dst]
      fc_weight_t: [in_feats, H*F]      torch fc.weight transposed
      attn_l/r:    [1, H, F]
    Returns:
      rst:  [N, H, F]
      attn: [H, N_dst, N_src] dense attention (0 where no edge).  The
            [H, dst, src] layout avoids an N^2-sized output transpose.
    """
    N, din = x.shape
    H, F = num_heads, out_feats
    HF = H * F

    # Fold attn_l / attn_r into ONE block-diagonal [HF, 2H] matrix so el|er
    # come from a single small matmul on top of the fused projection.
    al = attn_l.reshape(H, F).astype(jnp.float32)
    ar = attn_r.reshape(H, F).astype(jnp.float32)
    eye = jnp.eye(H, dtype=jnp.float32)
    a_l = (al[:, :, None] * eye[:, None, :]).reshape(HF, H)
    a_r = (ar[:, :, None] * eye[:, None, :]).reshape(HF, H)
    a_lr = jnp.concatenate([a_l, a_r], axis=1)      # [HF, 2H]

    # bf16 MXU operands (f32 accumulation happens inside the kernels).
    x_bf = x.astype(jnp.bfloat16)
    w_bf = fc_weight_t.astype(jnp.bfloat16)
    # Adjacency as int8 in [dst, src] layout: 4x less HBM/VMEM than f32 and the
    # in-kernel softmax reduces along the lane axis.
    adj_t = jnp.transpose((adj > 0).astype(jnp.int8))

    # ---- kernel 1: fused all-head projection, tiled over rows ---------------
    tn = _pick_row_tile(N)
    assert N % tn == 0
    fs_bf, elr = pl.pallas_call(
        _proj_kernel,
        out_shape=(
            jax.ShapeDtypeStruct((N, HF), jnp.bfloat16),
            jax.ShapeDtypeStruct((N, 2 * H), jnp.float32),
        ),
        grid_spec=pltpu.PrefetchScalarGridSpec(
            num_scalar_prefetch=0,
            grid=(N // tn,),
            in_specs=[
                pl.BlockSpec((tn, din), lambda i: (i, 0)),
                pl.BlockSpec((din, HF), lambda i: (0, 0)),
                pl.BlockSpec((HF, 2 * H), lambda i: (0, 0)),
            ],
            out_specs=[
                pl.BlockSpec((tn, HF), lambda i: (i, 0)),
                pl.BlockSpec((tn, 2 * H), lambda i: (i, 0)),
            ],
        ),
        compiler_params=pltpu.CompilerParams(
            dimension_semantics=("parallel",),
            vmem_limit_bytes=_VMEM_LIMIT),
    )(x_bf, w_bf, a_lr)

    # el transposed ONCE here ([N, H] -> [H, N], tiny) so kernel 2 never
    # re-transposes a grid-invariant input per head / per dst tile.
    el_t = jnp.transpose(elr[:, :H])                # [H, N]
    er = elr[:, H:]                                 # [N, H]

    # ---- kernel 2: masked edge-softmax + aggregation, tiled over dst --------
    tdst = dst_tile if dst_tile is not None else _pick_dst_tile(N, H, HF)
    assert N % tdst == 0
    kernel = functools.partial(_attn_agg_kernel, num_heads=H, out_feats=F,
                               negative_slope=negative_slope)
    rst_flat, attn = pl.pallas_call(
        kernel,
        out_shape=(
            jax.ShapeDtypeStruct((N, HF), jnp.float32),
            jax.ShapeDtypeStruct((H, N, N), jnp.float32),
        ),
        grid_spec=pltpu.PrefetchScalarGridSpec(
            num_scalar_prefetch=0,
            grid=(N // tdst,),
            in_specs=[
                pl.BlockSpec((N, HF), lambda j: (0, 0)),      # fs (grid-invariant)
                pl.BlockSpec((H, N), lambda j: (0, 0)),       # el^T (grid-invariant)
                pl.BlockSpec((tdst, H), lambda j: (j, 0)),    # er tile
                pl.BlockSpec((tdst, N), lambda j: (j, 0)),    # adj^T tile (int8)
            ],
            out_specs=[
                pl.BlockSpec((tdst, HF), lambda j: (j, 0)),       # rst tile
                pl.BlockSpec((H, tdst, N), lambda j: (0, j, 0)),  # attention tile
            ],
        ),
        compiler_params=pltpu.CompilerParams(
            dimension_semantics=("parallel",),
            vmem_limit_bytes=_VMEM_LIMIT),
    )(fs_bf, el_t, er, adj_t)

    rst = rst_flat.reshape(N, H, F)                 # [N, H, F] (module layout)
    return rst, attn


def _reference_gat(x, adj, fc_weight_t, attn_l, attn_r, H, F, ns):
    """Pure-JAX f32 reference of the same forward pass (dense-graph)."""
    N = x.shape[0]
    fs = (x @ fc_weight_t).reshape(N, H, F)
    el = jnp.sum(fs * attn_l, axis=-1)              # [N, H]
    er = jnp.sum(fs * attn_r, axis=-1)              # [N, H]
    e = el[:, None, :] + er[None, :, :]             # [src, dst, H]
    e = jnp.where(e > 0, e, ns * e)
    mask = (adj > 0)[:, :, None]
    e_m = jnp.where(mask, e, -1e30)
    m = jnp.max(e_m, axis=0, keepdims=True)
    p = jnp.exp(e_m - m) * adj[:, :, None]
    a = p / jnp.sum(p, axis=0, keepdims=True)
    rst = jnp.einsum('sdh,shf->dhf', a, fs)
    return rst, a


if __name__ == "__main__":
    # Small, module-consistent shapes.
    N = 32           # number of graph nodes
    IN_FEATS = 32
    OUT_FEATS = 16
    NUM_HEADS = 4
    NEG_SLOPE = 0.2

    key = jax.random.PRNGKey(0)
    k_x, k_adj, k_w, k_al, k_ar = jax.random.split(key, 5)

    x = jax.random.normal(k_x, (N, IN_FEATS), dtype=jnp.float32)

    # Random directed graph + self loops (no zero in-degree, as DGL requires).
    adj = (jax.random.uniform(k_adj, (N, N)) < 0.3).astype(jnp.float32)
    adj = jnp.maximum(adj, jnp.eye(N, dtype=jnp.float32))

    # Deterministic "xavier_normal_(gain=sqrt(2))"-style parameter init.
    gain = jnp.sqrt(2.0)
    std_fc = gain * jnp.sqrt(2.0 / (IN_FEATS + NUM_HEADS * OUT_FEATS))
    fc_weight_t = std_fc * jax.random.normal(
        k_w, (IN_FEATS, NUM_HEADS * OUT_FEATS), dtype=jnp.float32)
    std_attn = gain * jnp.sqrt(2.0 / (NUM_HEADS * OUT_FEATS + OUT_FEATS))
    attn_l = std_attn * jax.random.normal(
        k_al, (1, NUM_HEADS, OUT_FEATS), dtype=jnp.float32)
    attn_r = std_attn * jax.random.normal(
        k_ar, (1, NUM_HEADS, OUT_FEATS), dtype=jnp.float32)

    rst, attn = my_gat_conv(x, adj, fc_weight_t, attn_l, attn_r,
                            NUM_HEADS, OUT_FEATS, NEG_SLOPE)
    jax.block_until_ready((rst, attn))

    rst_ref, a_ref = _reference_gat(x, adj, fc_weight_t, attn_l, attn_r,
                                    NUM_HEADS, OUT_FEATS, NEG_SLOPE)
    attn_ref = jnp.transpose(a_ref, (2, 1, 0))      # [src,dst,H] -> [H,dst,src]

    assert rst.shape == (N, NUM_HEADS, OUT_FEATS)
    assert attn.shape == (NUM_HEADS, N, N)
    assert bool(jnp.all(jnp.isfinite(rst)))
    assert bool(jnp.all(jnp.isfinite(attn)))
    # bf16 MXU operands -> relaxed tolerances vs the pure-f32 reference.
    err_a = float(jnp.max(jnp.abs(attn - attn_ref)))
    err_r = float(jnp.max(jnp.abs(rst - rst_ref)))
    assert jnp.allclose(attn, attn_ref, atol=2e-2, rtol=2e-2), err_a
    assert jnp.allclose(rst, rst_ref, atol=5e-2, rtol=5e-2), err_r

    print("KERNEL_OK")
</pallas_src>

<mosaic_0001>
module attributes {stable_mosaic.version = 11 : i64} {
  func.func @_proj_kernel(%arg0: i32, %arg1: memref<16x32xbf16, #tpu.memory_space<vmem>>, %arg2: memref<32x64xbf16, #tpu.memory_space<vmem>>, %arg3: memref<64x8xf32, #tpu.memory_space<vmem>>, %arg4: memref<16x64xbf16, #tpu.memory_space<vmem>>, %arg5: memref<16x8xf32, #tpu.memory_space<vmem>>) attributes {dimension_semantics = [#tpu.dimension_semantics<parallel>], iteration_bounds = array<i64: 2>, scalar_prefetch = 0 : i64, scratch_operands = 0 : i64, tpu.core_type = #tpu.core_type<tc>, window_params = [{transform_indices = @transform_0, window_bounds = array<i64: 16, 32>}, {pipeline_mode = #tpu.pipeline_mode<synchronous>, transform_indices = @transform_1, window_bounds = array<i64: 32, 64>}, {pipeline_mode = #tpu.pipeline_mode<synchronous>, transform_indices = @transform_2, window_bounds = array<i64: 64, 8>}, {transform_indices = @transform_3, window_bounds = array<i64: 16, 64>}, {transform_indices = @transform_4, window_bounds = array<i64: 16, 8>}]} {
    %c0 = arith.constant 0 : index
    %c0_0 = arith.constant 0 : index
    %0 = vector.load %arg1[%c0, %c0_0] : memref<16x32xbf16, #tpu.memory_space<vmem>>, vector<16x32xbf16>
    %c0_1 = arith.constant 0 : index
    %c0_2 = arith.constant 0 : index
    %1 = vector.load %arg2[%c0_1, %c0_2] : memref<32x64xbf16, #tpu.memory_space<vmem>>, vector<32x64xbf16>
    %cst = arith.constant dense<0.000000e+00> : vector<16x64xf32>
    %2 = tpu.matmul %0, %1, %cst {dimension_numbers = #tpu.dot_dimension_numbers<[1], [0], [0], [1], [0, 0, 1, 1], [], []>} : vector<16x32xbf16>, vector<32x64xbf16>, vector<16x64xf32> -> vector<16x64xf32>
    %3 = arith.truncf %2 : vector<16x64xf32> to vector<16x64xbf16>
    %c0_3 = arith.constant 0 : index
    %c0_4 = arith.constant 0 : index
    %4 = vector.load %arg4[%c0_3, %c0_4] : memref<16x64xbf16, #tpu.memory_space<vmem>>, vector<16x64xbf16>
    tpu.vector_store %arg4[%c0_3, %c0_4], %3 {strides = array<i32>} : memref<16x64xbf16, #tpu.memory_space<vmem>>, vector<16x64xbf16>,
    %c0_5 = arith.constant 0 : index
    %c0_6 = arith.constant 0 : index
    %5 = vector.load %arg3[%c0_5, %c0_6] : memref<64x8xf32, #tpu.memory_space<vmem>>, vector<64x8xf32>
    %cst_7 = arith.constant dense<0.000000e+00> : vector<16x8xf32>
    %6 = tpu.matmul %2, %5, %cst_7 {dimension_numbers = #tpu.dot_dimension_numbers<[1], [0], [0], [1], [0, 0, 1, 1], [], []>} : vector<16x64xf32>, vector<64x8xf32>, vector<16x8xf32> -> vector<16x8xf32>
    %c0_8 = arith.constant 0 : index
    %c0_9 = arith.constant 0 : index
    %7 = vector.load %arg5[%c0_8, %c0_9] : memref<16x8xf32, #tpu.memory_space<vmem>>, vector<16x8xf32>
    tpu.vector_store %arg5[%c0_8, %c0_9], %6 {strides = array<i32>} : memref<16x8xf32, #tpu.memory_space<vmem>>, vector<16x8xf32>,
    return
  }
  func.func @transform_0(%arg0: i32) -> (i32, i32) {
    %c0_i32 = arith.constant 0 : i32
    %c0_i32_0 = arith.constant 0 : i32
    return %arg0, %c0_i32 : i32, i32
  }
  func.func @transform_1(%arg0: i32) -> (i32, i32) {
    %c0_i32 = arith.constant 0 : i32
    %c0_i32_0 = arith.constant 0 : i32
    %c0_i32_1 = arith.constant 0 : i32
    return %c0_i32, %c0_i32_0 : i32, i32
  }
  func.func @transform_2(%arg0: i32) -> (i32, i32) {
    %c0_i32 = arith.constant 0 : i32
    %c0_i32_0 = arith.constant 0 : i32
    %c0_i32_1 = arith.constant 0 : i32
    return %c0_i32, %c0_i32_0 : i32, i32
  }
  func.func @transform_3(%arg0: i32) -> (i32, i32) {
    %c0_i32 = arith.constant 0 : i32
    %c0_i32_0 = arith.constant 0 : i32
    return %arg0, %c0_i32 : i32, i32
  }
  func.func @transform_4(%arg0: i32) -> (i32, i32) {
    %c0_i32 = arith.constant 0 : i32
    %c0_i32_0 = arith.constant 0 : i32
    return %arg0, %c0_i32 : i32, i32
  }
}

</mosaic_0001>

<llo_original>
// kernel: tpu_custom_call.1
$region0: #{tpu_custom_call.1}
  #allocation0 [shape = 'u32[]', space=smem, size = 0x4, offset = 0x4, fixed_abs, tag = 'smem constant byte address 0x4 - core index']
  #allocation1 [shape = 'u32[72,128]{1,0:T(1,128)}', space=vmem, size = 0x9000, scoped, tag = 'internal scratch']
  %s0 = inlined_call_operand.vmem [shape: bf16[32,32], index: 0, kind: input, shape index: {}]
  %s1 = inlined_call_operand.vmem [shape: bf16[32,64], index: 1, kind: input, shape index: {}]
  %s2 = inlined_call_operand.vmem [shape: f32[64,8], index: 2, kind: input, shape index: {}]
  %s3 = inlined_call_operand.hbm [shape: bf16[32,64], index: 3, kind: output, shape index: {0}]
  %s4 = inlined_call_operand.vmem [shape: f32[32,8], index: 4, kind: output, shape index: {1}]
  %5 = xla_tuple %s3, %s4
  %s6 = sld [smem:[#allocation0]]
  $region53: #{tpu_custom_call.1} parent=0
    _
  %s8 = ssub.s32 1, %s6
  %s9 = scalar_select 0, %s8, %s6
  $region1: #{tpu_custom_call.1} parent=0
    #allocation2 [shape = 'u8[8192]{0}', space=vmem, size = 0x2000, scoped, tag = 'output window, operand 0']
    #allocation3 [shape = 's32[2]{0}', space=sflag, size = 0x8, scoped, tag = 'scoped memory for tpu_custom_call.1']
    %10 = vsyncpa [#allocation3], 0
    %s11 = scalar_lea.sflag [#allocation3], 1
    %12 = vsyncpa %s11, 0
    loop: start=0, step=1, limit=4
    $region2: #{tpu_custom_call.1} parent=1 // loop_pre_header
      _
    $region3: #{tpu_custom_call.1} parent=1 // loop_header
      %s14 = sphi 0, %s18
      %p15 = scmp.ge.s32.totalorder %s14, 4
      %s24 = sphi 0, %s26
      %s27 = sphi 0, %s24
      %s28 = sphi 0, %s27
      %s44 = sphi 0, %s28
      %s48 = sphi 0, %s48
      %s50 = sphi 0, %s48
      %s51 = sphi 0, %s50
      %s65 = sphi 0, %s51
      %s69 = sphi 0, %s69
      %s71 = sphi 0, %s69
      %s72 = sphi 0, %s71
      %s86 = sphi 0, %s72
      %s92 = sphi 0, %s94
      %s95 = sphi 0, %s92
      %s96 = sphi 0, %s95
      %s112 = sphi 0, %s96
      %s118 = sphi 0, %s120
      %s121 = sphi 0, %s118
      %s122 = sphi 0, %s121
      %s138 = sphi 0, %s122
    $region4: #{tpu_custom_call.1} parent=1 // loop_header_branch
      %17 = sbr.rel (%p15) target = $region8
    $region5: #{tpu_custom_call.1} parent=1 // loop_body
      %s19 = ssub.s32 %s14, 1
      %s20 = ssub.s32 %s14, 2
      %s21 = sadd.s32 %s14, 1
      %s22 = ssub.s32 %s14, %s21
      %p23 = scmp.eq.s32.totalorder %s22, 0
      %s25 = sadd.s32 %s24, 1
      %s26 = scalar_select %p23, %s24, %s25
      %p29 = pneg %p23
      %p30 = scmp.eq.s32.totalorder %s14, 1
      %p31 = por %p29, %p30
      %p32 = scmp.ne.s32.totalorder %s24, %s27
      %p33 = scmp.eq.s32.totalorder %s14, 0
      %p34 = por %p32, %p33
      %p35 = scmp.ne.s32.totalorder %s24, %s27
      %p36 = scmp.eq.s32.totalorder %s19, 1
      %p37 = por %p35, %p36
      %p38 = scmp.ne.s32.totalorder %s27, %s28
      %p39 = scmp.eq.s32.totalorder %s19, 0
      %p40 = por %p38, %p39
      %p41 = scmp.ne.s32.totalorder %s27, %s28
      %p42 = scmp.eq.s32.totalorder %s20, 1
      %p43 = por %p41, %p42
      %p45 = scmp.ne.s32.totalorder %s28, %s44
      %p46 = scmp.eq.s32.totalorder %s20, 0
      %p47 = por %p45, %p46
      %s49 = sadd.s32 %s48, 1
      %p52 = scmp.eq.s32.totalorder %s14, 1
      %p53 = scmp.ne.s32.totalorder %s48, %s50
      %p54 = scmp.eq.s32.totalorder %s14, 0
      %p55 = por %p53, %p54
      %p56 = scmp.ne.s32.totalorder %s48, %s50
      %p57 = scmp.eq.s32.totalorder %s19, 1
      %p58 = por %p56, %p57
      %p59 = scmp.ne.s32.totalorder %s50, %s51
      %p60 = scmp.eq.s32.totalorder %s19, 0
      %p61 = por %p59, %p60
      %p62 = scmp.ne.s32.totalorder %s50, %s51
      %p63 = scmp.eq.s32.totalorder %s20, 1
      %p64 = por %p62, %p63
      %p66 = scmp.ne.s32.totalorder %s51, %s65
      %p67 = scmp.eq.s32.totalorder %s20, 0
      %p68 = por %p66, %p67
      %s70 = sadd.s32 %s69, 1
      %p73 = scmp.eq.s32.totalorder %s14, 1
      %p74 = scmp.ne.s32.totalorder %s69, %s71
      %p75 = scmp.eq.s32.totalorder %s14, 0
      %p76 = por %p74, %p75
      %p77 = scmp.ne.s32.totalorder %s69, %s71
      %p78 = scmp.eq.s32.totalorder %s19, 1
      %p79 = por %p77, %p78
      %p80 = scmp.ne.s32.totalorder %s71, %s72
      %p81 = scmp.eq.s32.totalorder %s19, 0
      %p82 = por %p80, %p81
      %p83 = scmp.ne.s32.totalorder %s71, %s72
      %p84 = scmp.eq.s32.totalorder %s20, 1
      %p85 = por %p83, %p84
      %p87 = scmp.ne.s32.totalorder %s72, %s86
      %p88 = scmp.eq.s32.totalorder %s20, 0
      %p89 = por %p87, %p88
      %s90 = ssub.s32 %s14, %s21
      %p91 = scmp.eq.s32.totalorder %s90, 0
      %s93 = sadd.s32 %s92, 1
      %s94 = scalar_select %p91, %s92, %s93
      %p97 = pneg %p91
      %p98 = scmp.eq.s32.totalorder %s14, 1
      %p99 = por %p97, %p98
      %p100 = scmp.ne.s32.totalorder %s92, %s95
      %p101 = scmp.eq.s32.totalorder %s14, 0
      %p102 = por %p100, %p101
      %p103 = scmp.ne.s32.totalorder %s92, %s95
      %p104 = scmp.eq.s32.totalorder %s19, 1
      %p105 = por %p103, %p104
      %p106 = scmp.ne.s32.totalorder %s95, %s96
      %p107 = scmp.eq.s32.totalorder %s19, 0
      %p108 = por %p106, %p107
      %p109 = scmp.ne.s32.totalorder %s95, %s96
      %p110 = scmp.eq.s32.totalorder %s20, 1
      %p111 = por %p109, %p110
      %p113 = scmp.ne.s32.totalorder %s96, %s112
      %p114 = scmp.eq.s32.totalorder %s20, 0
      %p115 = por %p113, %p114
      %s116 = ssub.s32 %s14, %s21
      %p117 = scmp.eq.s32.totalorder %s116, 0
      %s119 = sadd.s32 %s118, 1
      %s120 = scalar_select %p117, %s118, %s119
      %p123 = pneg %p117
      %p124 = scmp.eq.s32.totalorder %s14, 1
      %p125 = por %p123, %p124
      %p126 = scmp.ne.s32.totalorder %s118, %s121
      %p127 = scmp.eq.s32.totalorder %s14, 0
      %p128 = por %p126, %p127
      %p129 = scmp.ne.s32.totalorder %s118, %s121
      %p130 = scmp.eq.s32.totalorder %s19, 1
      %p131 = por %p129, %p130
      %p132 = scmp.ne.s32.totalorder %s121, %s122
      %p133 = scmp.eq.s32.totalorder %s19, 0
      %p134 = por %p132, %p133
      %p135 = scmp.ne.s32.totalorder %s121, %s122
      %p136 = scmp.eq.s32.totalorder %s20, 1
      %p137 = por %p135, %p136
      %p139 = scmp.ne.s32.totalorder %s122, %s138
      %p140 = scmp.eq.s32.totalorder %s20, 0
      %p141 = por %p139, %p140
      %p142 = scmp.le.s32.totalorder 1, %s14
      %p143 = scmp.lt.s32.totalorder %s14, 3
      %p144 = pnand %p142, %p143
      %p145 = pneg %p144
      // Predicated region
      $region9: #{tpu_custom_call.1} parent=5 // pred_check
        _
      $region10: #{tpu_custom_call.1} parent=5 // pred_check_branch
        %147 = sbr.rel (%p144) target = $region12
      $region11: #{tpu_custom_call.1} parent=5 // pred_region
        %s148 = ssub.s32 %s14, 1
        // Predicated region
        $region13: #{tpu_custom_call.1} parent=11 // pred_check
          %p149 = pneg %p61
        $region14: #{tpu_custom_call.1} parent=11 // pred_check_branch
          %151 = sbr.rel (%p149) target = $region16
        $region15: #{tpu_custom_call.1} parent=11 // pred_region
          _
        $region16: #{tpu_custom_call.1} parent=11 // pred_fallthru
          _
        // Predicated region
        $region17: #{tpu_custom_call.1} parent=11 // pred_check
          %p152 = pneg %p82
        $region18: #{tpu_custom_call.1} parent=11 // pred_check_branch
          %154 = sbr.rel (%p152) target = $region20
        $region19: #{tpu_custom_call.1} parent=11 // pred_region
          _
        $region20: #{tpu_custom_call.1} parent=11 // pred_fallthru
          _
      $region12: #{tpu_custom_call.1} parent=5 // pred_fallthru
        _
      %p155 = scmp.lt.s32.totalorder %s14, 2
      // Predicated region
      $region21: #{tpu_custom_call.1} parent=5 // pred_check
        %p156 = pneg %p155
      $region22: #{tpu_custom_call.1} parent=5 // pred_check_branch
        %158 = sbr.rel (%p156) target = $region24
      $region23: #{tpu_custom_call.1} parent=5 // pred_region
        // Predicated region
        $region25: #{tpu_custom_call.1} parent=23 // pred_check
          %p159 = pneg %p34
        $region26: #{tpu_custom_call.1} parent=23 // pred_check_branch
          %161 = sbr.rel (%p159) target = $region28
        $region27: #{tpu_custom_call.1} parent=23 // pred_region
          %s162 = smul.u32 2, %s14
          %p163 = scmp.lt.s32.totalorder %s162, 3
          %s164 = scalar_select %p163, %s162, 3
          %s165 = smul.addr %s164, 4
          %s166 = scalar_lea.vmem %s0, %s165
          %s167 = smul.u32 2, %s14
        $region28: #{tpu_custom_call.1} parent=23 // pred_fallthru
          _
      $region24: #{tpu_custom_call.1} parent=5 // pred_fallthru
        _
      %p168 = scmp.le.s32.totalorder 1, %s14
      %p169 = scmp.lt.s32.totalorder %s14, 3
      %p170 = pnand %p168, %p169
      %p171 = pneg %p170
      // Predicated region
      $region29: #{tpu_custom_call.1} parent=5 // pred_check
        _
      $region30: #{tpu_custom_call.1} parent=5 // pred_check_branch
        %173 = sbr.rel (%p170) target = $region32
      $region31: #{tpu_custom_call.1} parent=5 // pred_region
        %s174 = ssub.s32 %s14, 1
        %s175 = smul.u32 2, %s19
        %p176 = scmp.lt.s32.totalorder %s175, 3
        %s177 = scalar_select %p176, %s175, 3
        %s178 = smul.addr %s177, 4
        %s179 = scalar_lea.vmem %s0, %s178
        %p180 = pneg %p40
        %p181 = pneg %p37
        %p182 = pneg %p61
        %p183 = pneg %p58
        %p184 = pneg %p82
        %p185 = pneg %p79
        %p186 = pneg %p108
        %p187 = pneg %p105
        %s188 = sand.u32 %s95, 1
        %s189 = scalar_lea.sflag [#allocation3], %s188
        %s190 = sand.u32 %s95, 1
        %s191 = smul.addr %s190, 8
        %s192 = scalar_lea.vmem [#allocation2], %s191
        %p193 = pneg %p134
        %p194 = pneg %p131
        %s195 = smul.u32 2, %s19
        %p196 = scmp.lt.s32.totalorder %s195, 3
        %s197 = scalar_select %p196, %s195, 3
        %s198 = smul.addr %s197, 8
        %s199 = scalar_lea.vmem %s4, %s198
        %s200 = smul.u32 2, %s19
        %p201 = scmp.lt.s32.totalorder %s200, 3
        %s202 = scalar_select %p201, %s200, 3
        %s203 = smul.addr %s202, 4
        %s204 = scalar_lea.vmem %s0, %s203
        %s205 = smul.u32 2, %s19
        %s206 = smul.u32 2, %s19
        %s207 = smul.u32 2, %s19
        %p208 = scmp.lt.s32.totalorder %s207, 3
        %s209 = scalar_select %p208, %s207, 3
        %s210 = smul.addr %s209, 8
        %s211 = scalar_lea.vmem %s4, %s210
        %s212 = smul.u32 2, %s19
        %v214 = vld [vmem:[%s204] sm:$0xf]
        %v215 = vld [vmem:[%s204 + $0x4] sm:$0xf]
        %v216 = vld [vmem:[%s1] sm:$0xf]
        %v217 = vld [vmem:[%s1 + $0x4] sm:$0xf]
        %v218 = vld [vmem:[%s1 + $0x8] sm:$0xf]
        %v219 = vld [vmem:[%s1 + $0xc] sm:$0xf]
        %v222 = vunpack.c.l.b16 %v214
        %v223 = vunpack.c.l.b16 %v215
        %v224 = vpack.c.b16 %v223, %v222
        %v229 = vunpack.c.l.b16 %v216
        %v230 = vunpack.c.l.b16 %v217
        %v231 = vunpack.c.l.b16 %v218
        %v232 = vunpack.c.l.b16 %v219
        %v233 = vpack.c.b16 %v230, %v229
        %v234 = vpack.c.b16 %v232, %v231
        %vm237 = vcmask 261120
        %v239 = vsel %vm237, %v224, 0
        %241 = vmatpush.bf16.msra.mxu0 0
        %242 = vmatpush.bf16.msra.mxu0 0
        %243 = vmatpush.bf16.msra.mxu0 0
        %244 = vmatpush.bf16.msra.mxu0 0
        %245 = vmatpush.bf16.msra.mxu0 0
        %246 = vmatpush.bf16.msra.mxu0 0
        %247 = vmatpush.bf16.msra.mxu0 %v234
        %248 = vmatpush.bf16.msra.mxu0 %v233
        %249 = vmatmul.bf16.gmra.mxu0 %v239
        %v250 = vpop.f32.mrf.mxu0
        %v251 = vadd.f32 0.0, %v250
        %v252 = vpop.f32.mrf.mxu0
        %v253 = vadd.f32 0.0, %v252
        %254 = vdwg.mxu0
        %v255 = vpack.c.bf16 %v251, %v251
        %v256 = vpack.c.bf16 %v253, %v253
        %vm257 = vcmask 519168
        %258 = vst.msk [vmem:[%s192] sm:$0xf] %vm257, %v255
        %259 = vst.msk [vmem:[%s192 + $0x4] sm:$0xf] %vm257, %v256
        %v260 = vld [vmem:[%s2] sm:$0xff]
        %v261 = vld [vmem:[%s2 + $0x8] sm:$0xff]
        %v262 = vld [vmem:[%s2 + $0x10] sm:$0xff]
        %v263 = vld [vmem:[%s2 + $0x18] sm:$0xff]
        %v264 = vld [vmem:[%s2 + $0x20] sm:$0xff]
        %v265 = vld [vmem:[%s2 + $0x28] sm:$0xff]
        %v266 = vld [vmem:[%s2 + $0x30] sm:$0xff]
        %v267 = vld [vmem:[%s2 + $0x38] sm:$0xff]
        %vm268 = vcmask 523264
        %v270 = vsel %vm268, %v251, 0
        %v273 = vsel %vm268, %v253, 0
        %275 = vmatpush.msra.mxu0 0.0
        %276 = vmatpush.msra.mxu0 0.0
        %277 = vmatpush.msra.mxu0 0.0
        %278 = vmatpush.msra.mxu0 0.0
        %279 = vmatpush.msra.mxu0 0.0
        %280 = vmatpush.msra.mxu0 0.0
        %281 = vmatpush.msra.mxu0 0.0
        %282 = vmatpush.msra.mxu0 0.0
        %283 = vmatpush.msra.mxu0 %v267
        %284 = vmatpush.msra.mxu0 %v266
        %285 = vmatpush.msra.mxu0 %v265
        %286 = vmatpush.msra.mxu0 %v264
        %287 = vmatpush.msra.mxu0 %v263
        %288 = vmatpush.msra.mxu0 %v262
        %289 = vmatpush.msra.mxu0 %v261
        %290 = vmatpush.msra.mxu0 %v260
        %291 = vmatmul.f32.gmra.mxu0 %v270
        %v292 = vpop.f32.mrf.mxu0
        %v293 = vadd.f32 0.0, %v292
        %294 = vmatmul.f32.gmra.mxu0 %v273
        %v295 = vpop.f32.mrf.mxu0
        %v296 = vadd.f32 0.0, %v295
        %297 = vdwg.mxu0
        %vm298 = vcmask 64512
        %299 = vst.msk [vmem:[%s211] sm:$0xff] %vm298, %v293
        %300 = vst.msk [vmem:[%s211 + $0x8] sm:$0xff] %vm298, %v296
        %s301 = sand.u32 %s95, 1
        %s302 = scalar_lea.sflag [#allocation3], %s301
        %s303 = sand.u32 %s95, 1
        %s304 = smul.addr %s303, 8
        %s305 = scalar_lea.vmem [#allocation2], %s304
        %s306 = smul.u32 2, %s19
        %p307 = scmp.lt.s32.totalorder %s306, 3
        %s308 = scalar_select %p307, %s306, 3
        %s309 = smul.addr %s308, 8
        %s310 = scalar_lea.vmem %s4, %s309
        // Predicated region
        $region33: #{tpu_custom_call.1} parent=31 // pred_check
          %p311 = pneg %p105
        $region34: #{tpu_custom_call.1} parent=31 // pred_check_branch
          %313 = sbr.rel (%p311) target = $region36
        $region35: #{tpu_custom_call.1} parent=31 // pred_region
          %s314 = smul.u32 2, %s19
          %316 = vsyncadd %s302, 0
          %s317 = smul.addr %s314, 4
          %s318 = scalar_lea.hbm %s3, %s317
          %s319 = sshll.u32 %s305, 4
          %s320 = int_to_ptr.vmem [resolvable:$true] %s319
          %s321 = sshll.u32 %s318, 4
          %s322 = int_to_ptr.hbm [resolvable:$true] %s321
          %327 = dma.vmem_to_hbm [thread:$0]  %s320, 128, %s322, %s302, 64, 64, 4
        $region36: #{tpu_custom_call.1} parent=31 // pred_fallthru
          _
        // Predicated region
        $region37: #{tpu_custom_call.1} parent=31 // pred_check
          %p328 = pneg %p131
        $region38: #{tpu_custom_call.1} parent=31 // pred_check_branch
          %330 = sbr.rel (%p328) target = $region40
        $region39: #{tpu_custom_call.1} parent=31 // pred_region
          %s331 = smul.u32 2, %s19
        $region40: #{tpu_custom_call.1} parent=31 // pred_fallthru
          _
      $region32: #{tpu_custom_call.1} parent=5 // pred_fallthru
        _
      %p332 = scmp.le.s32.totalorder 2, %s14
      // Predicated region
      $region41: #{tpu_custom_call.1} parent=5 // pred_check
        %p333 = pneg %p332
      $region42: #{tpu_custom_call.1} parent=5 // pred_check_branch
        %335 = sbr.rel (%p333) target = $region44
      $region43: #{tpu_custom_call.1} parent=5 // pred_region
        %s336 = ssub.s32 %s14, 2
        // Predicated region
        $region45: #{tpu_custom_call.1} parent=43 // pred_check
          %p337 = pneg %p111
        $region46: #{tpu_custom_call.1} parent=43 // pred_check_branch
          %339 = sbr.rel (%p337) target = $region48
        $region47: #{tpu_custom_call.1} parent=43 // pred_region
          %s340 = sand.u32 %s96, 1
          %s341 = scalar_lea.sflag [#allocation3], %s340
          %s342 = sand.u32 %s96, 1
          %s343 = smul.addr %s342, 8
          %s344 = scalar_lea.vmem [#allocation2], %s343
          %346 = dma.done %s341, 128
        $region48: #{tpu_custom_call.1} parent=43 // pred_fallthru
          _
        // Predicated region
        $region49: #{tpu_custom_call.1} parent=43 // pred_check
          %p347 = pneg %p137
        $region50: #{tpu_custom_call.1} parent=43 // pred_check_branch
          %349 = sbr.rel (%p347) target = $region52
        $region51: #{tpu_custom_call.1} parent=43 // pred_region
          %s350 = smul.u32 2, %s20
          %p351 = scmp.lt.s32.totalorder %s350, 3
          %s352 = scalar_select %p351, %s350, 3
          %s353 = smul.addr %s352, 8
          %s354 = scalar_lea.vmem %s4, %s353
        $region52: #{tpu_custom_call.1} parent=43 // pred_fallthru
          _
      $region44: #{tpu_custom_call.1} parent=5 // pred_fallthru
        _
    $region6: #{tpu_custom_call.1} parent=1 // loop_footer
      %s18 = sadd.s32 1, %s14
    $region7: #{tpu_custom_call.1} parent=1 // loop_footer_branch
      %13 = sbr.rel target = $region3
    $region8: #{tpu_custom_call.1} parent=1 // loop_exit
      _
    %355 = vsyncpa [#allocation3], 1
    %s356 = scalar_lea.sflag [#allocation3], 1
    %357 = vsyncpa %s356, 1

</llo_original>
